<compile_context>
chip_gen: v6e
topology: v6e:2x2x1
jax: 0.10.0
libtpu: 0.0.40
codegen_flags: <defaults>
</compile_context>

<pallas_src>
import functools

import jax
import jax.numpy as jnp
from jax.experimental import pallas as pl
from jax.experimental.pallas import tpu as pltpu


def _round_up(x, m):
    return -(-x // m) * m


def _head_kernel(z_ref, w1_ref, b1_ref, w2_ref, b2_ref, w3_ref, b3_ref,
                 out_ref, acc_ref, *, n_total, block_n):
    n_idx = pl.program_id(1)
    n_last = pl.num_programs(1) - 1

    @pl.when(n_idx == 0)
    def _():
        acc_ref[...] = jnp.zeros_like(acc_ref)

    tb, tn, _ = z_ref.shape
    z = z_ref[...].astype(jnp.float32)          # (TB, TN, D); no-op when z is f32

    rem = n_total % block_n                     # static Python int
    if rem == 0:
        # Hot path: plain cast + sum. The 1/N scale is applied once in the finalize.
        acc_ref[...] += jnp.sum(z, axis=1)
    else:
        @pl.when(n_idx != n_last)
        def _():
            acc_ref[...] += jnp.sum(z, axis=1)

        @pl.when(n_idx == n_last)
        def _():
            # Only the single ragged token tile pays for the iota/select mask.
            # Select (not multiply-by-zero) so padded garbage/NaN rows contribute 0.
            t_ids = jax.lax.broadcasted_iota(jnp.int32, (tb, tn, 1), 1)
            zm = jnp.where(t_ids < rem, z, jnp.float32(0.0))
            acc_ref[...] += jnp.sum(zm, axis=1)

    @pl.when(n_idx == n_last)
    def _():
        pooled = acc_ref[...] * jnp.float32(1.0 / n_total)   # token mean, f32
        cdt = w1_ref.dtype                                   # bf16 by default (MXU-native)
        h = jnp.dot(pooled.astype(cdt), w1_ref[...],
                    preferred_element_type=jnp.float32)
        h = jnp.maximum(h + b1_ref[...].astype(jnp.float32), 0.0)
        h = jnp.dot(h.astype(cdt), w2_ref[...],
                    preferred_element_type=jnp.float32)
        h = jnp.maximum(h + b2_ref[...].astype(jnp.float32), 0.0)
        logits = jnp.dot(h.astype(cdt), w3_ref[...],
                         preferred_element_type=jnp.float32)
        logits = logits + b3_ref[...].astype(jnp.float32)
        out_ref[...] = logits.astype(out_ref.dtype)


def _vmem_capacity_bytes():
    try:
        return int(pltpu.get_tpu_info().vmem_capacity_bytes)
    except Exception:
        return 64 * 1024 * 1024     # conservative: v7x per-TensorCore VMEM


def classification_head(z, params, *, param_dtype=jnp.bfloat16,
                        out_dtype=jnp.float32, tb_max=128, tn_max=None,
                        vmem_budget_bytes=None):
    """mean over tokens -> fc1 -> relu -> fc2 -> relu -> classifier.

    z is streamed in its native dtype (cast it upstream if bf16 streaming is wanted).
    """
    B, N, D = z.shape
    H = params["w1"].shape[1]
    C = params["w3"].shape[1]
    z_itemsize = jnp.dtype(z.dtype).itemsize

    # ---- Lane-dense classifier output: zero-pad C up to a multiple of 128. ----
    C_pad = _round_up(C, 128)
    w1, b1 = params["w1"], params["b1"]
    w2, b2 = params["w2"], params["b2"]
    w3, b3 = params["w3"], params["b3"]
    if C_pad != C:
        w3 = jnp.pad(w3, ((0, 0), (0, C_pad - C)))
        b3 = jnp.pad(b3, ((0, 0), (0, C_pad - C)))
    if param_dtype is not None:
        # Weights are tiny vs z: the cast is cheap, buys the native bf16 MXU path and
        # halves the resident weight footprint in VMEM.
        w1, b1, w2, b2, w3, b3 = (a.astype(param_dtype)
                                  for a in (w1, b1, w2, b2, w3, b3))
    p_itemsize = jnp.dtype(w1.dtype).itemsize

    # ---- Batch tiling (parallel axis). z is never padded in the wrapper: ragged
    # ---- batch tiles are handled by Pallas block padding (padded rows dropped).
    tb_max = max(8, (int(tb_max) // 8) * 8)      # keep MXU/sublane-friendly (128 default)
    if B <= tb_max:
        # Prefer >=2 batch tiles when the batch is big enough (keeps both v7x
        # TensorCores fed via the "parallel" axis) without going under 8 MXU rows.
        half = _round_up(-(-B // 2), 8)
        TB = half if (B >= 16 and half < B) else B
    else:
        TB = tb_max

    # ---- VMEM budget -> token tile size (reduction axis). ----
    if vmem_budget_bytes is None:
        # ~48 MiB on v7x (64 MiB physical), ~96 MiB on v5e/v6e (128 MiB physical).
        vmem_budget_bytes = (3 * _vmem_capacity_bytes()) // 4
    weight_bytes = p_itemsize * (D * H + H * H + H * C_pad + 2 * H + C_pad)
    fixed_bytes = (2 * weight_bytes              # constant-index inputs still double-buffer
                   + 4 * TB * D                  # f32 accumulator scratch
                   + 2 * 4 * TB * C_pad)         # double-buffered output block
    # NOTE: pipeline_mode=pl.Buffered(1) on the six constant-index weight/bias specs
    # would drop the 2x weight term; kept at default double-buffering for portability.
    z_budget = max(int(vmem_budget_bytes) - fixed_bytes, 2 * 1024 * 1024)
    # Live bytes per streamed element: 2 pipeline buffers in z's dtype + the in-kernel
    # f32 upcast/reduce temporary (+ headroom) so the cast can't overshoot VMEM.
    per_elem = 2 * z_itemsize + 4 + 4
    sub_mult = {4: 8, 2: 16, 1: 32}.get(z_itemsize, 8)   # keep bf16/int8 tiles vreg-dense
    tn_fit = max(sub_mult, z_budget // max(1, TB * D * per_elem))
    if tn_max is not None:
        tn_fit = min(tn_fit, int(tn_max))
    if N <= tn_fit:
        TN = N
    else:
        TN = max(sub_mult, (tn_fit // sub_mult) * sub_mult)

    grid = (pl.cdiv(B, TB), pl.cdiv(N, TN))

    flops = 2 * B * N * D + 2 * B * (D * H + H * H + H * C_pad)
    bytes_accessed = B * N * D * z_itemsize + weight_bytes + 4 * B * C_pad

    out = pl.pallas_call(
        functools.partial(_head_kernel, n_total=N, block_n=TN),
        out_shape=jax.ShapeDtypeStruct((B, C_pad), out_dtype),
        grid=grid,
        in_specs=[
            pl.BlockSpec((TB, TN, D), lambda b, n: (b, n, 0)),
            # Weights/biases: constant index_map -> DMA'd once, stay VMEM-resident.
            pl.BlockSpec((D, H), lambda b, n: (0, 0)),
            pl.BlockSpec((1, H), lambda b, n: (0, 0)),
            pl.BlockSpec((H, H), lambda b, n: (0, 0)),
            pl.BlockSpec((1, H), lambda b, n: (0, 0)),
            pl.BlockSpec((H, C_pad), lambda b, n: (0, 0)),
            pl.BlockSpec((1, C_pad), lambda b, n: (0, 0)),
        ],
        out_specs=pl.BlockSpec((TB, C_pad), lambda b, n: (b, 0)),
        scratch_shapes=[pltpu.VMEM((TB, D), jnp.float32)],
        compiler_params=pltpu.CompilerParams(
            dimension_semantics=("parallel", "arbitrary"),
            vmem_limit_bytes=int(min(int(vmem_budget_bytes) + 8 * 1024 * 1024,
                                     128 * 1024 * 1024)),
        ),
        cost_estimate=pl.CostEstimate(
            flops=int(flops),
            transcendentals=0,
            bytes_accessed=int(bytes_accessed),
        ),
    )(z, w1, b1, w2, b2, w3, b3)

    return out[:, :C]


def init_params(key, input_dim, num_classes, hidden_dim):
    k1, k2, k3, k4, k5, k6 = jax.random.split(key, 6)
    scale1 = 1.0 / jnp.sqrt(input_dim)
    scale2 = 1.0 / jnp.sqrt(hidden_dim)
    return {
        "w1": jax.random.uniform(k1, (input_dim, hidden_dim), jnp.float32, -scale1, scale1),
        "b1": jax.random.uniform(k2, (1, hidden_dim), jnp.float32, -scale1, scale1),
        "w2": jax.random.uniform(k3, (hidden_dim, hidden_dim), jnp.float32, -scale2, scale2),
        "b2": jax.random.uniform(k4, (1, hidden_dim), jnp.float32, -scale2, scale2),
        "w3": jax.random.uniform(k5, (hidden_dim, num_classes), jnp.float32, -scale2, scale2),
        "b3": jax.random.uniform(k6, (1, num_classes), jnp.float32, -scale2, scale2),
    }


def reference(z, p):
    pooled = z.mean(axis=1)
    h = jax.nn.relu(pooled @ p["w1"] + p["b1"])
    h = jax.nn.relu(h @ p["w2"] + p["b2"])
    return h @ p["w3"] + p["b3"]


if __name__ == "__main__":
    B, N, D = 2, 8, 32      # batch, tokens, feature dim (input_dim)
    H, C = 32, 8            # hidden_dim, num_classes

    key = jax.random.PRNGKey(0)
    kz, kp = jax.random.split(key)
    z = jax.random.normal(kz, (B, N, D), dtype=jnp.float32)
    params = init_params(kp, D, C, H)
    ref = reference(z, params)

    # 1) f32 weights: tight check of the streamed pooling + FC pipeline + padded C.
    out_f32 = jax.block_until_ready(classification_head(z, params, param_dtype=jnp.float32))
    assert out_f32.shape == (B, C)
    assert jnp.allclose(out_f32, ref, atol=1e-3, rtol=1e-3)

    # 2) Default bf16 weights (native MXU path); looser tolerance.
    out_bf16 = jax.block_until_ready(classification_head(z, params))
    assert out_bf16.shape == (B, C)
    assert jnp.allclose(out_bf16, ref, atol=5e-2, rtol=5e-2)

    # 3) Ragged token axis: N=20 with TN forced to 8 -> 3 token tiles, masked last tile.
    z2 = jax.random.normal(jax.random.PRNGKey(1), (B, 20, D), dtype=jnp.float32)
    out_ragged = jax.block_until_ready(
        classification_head(z2, params, param_dtype=jnp.float32, tn_max=8))
    assert jnp.allclose(out_ragged, reference(z2, params), atol=1e-3, rtol=1e-3)

    # 4) Ragged batch axis (no wrapper pad over z): B=12 with TB=8 -> 2 batch tiles,
    #    last one partial; padded output rows are dropped by Pallas.
    z3 = jax.random.normal(jax.random.PRNGKey(2), (12, N, D), dtype=jnp.float32)
    out_rb = jax.block_until_ready(
        classification_head(z3, params, param_dtype=jnp.float32, tb_max=8))
    assert out_rb.shape == (12, C)
    assert jnp.allclose(out_rb, reference(z3, params), atol=1e-3, rtol=1e-3)

    print("KERNEL_OK")
</pallas_src>

<mosaic_0001>
module attributes {stable_mosaic.version = 11 : i64} {
  func.func @_head_kernel(%arg0: i32, %arg1: i32, %arg2: memref<2x8x32xf32, #tpu.memory_space<vmem>>, %arg3: memref<32x32xf32, #tpu.memory_space<vmem>>, %arg4: memref<1x32xf32, #tpu.memory_space<vmem>>, %arg5: memref<32x32xf32, #tpu.memory_space<vmem>>, %arg6: memref<1x32xf32, #tpu.memory_space<vmem>>, %arg7: memref<32x128xf32, #tpu.memory_space<vmem>>, %arg8: memref<1x128xf32, #tpu.memory_space<vmem>>, %arg9: memref<2x128xf32, #tpu.memory_space<vmem>>, %arg10: memref<2x32xf32, #tpu.memory_space<vmem>>) attributes {dimension_semantics = [#tpu.dimension_semantics<parallel>, #tpu.dimension_semantics<arbitrary>], iteration_bounds = array<i64: 1, 1>, scalar_prefetch = 0 : i64, scratch_operands = 1 : i64, tpu.core_type = #tpu.core_type<tc>, window_params = [{transform_indices = @transform_0, window_bounds = array<i64: 2, 8, 32>}, {pipeline_mode = #tpu.pipeline_mode<synchronous>, transform_indices = @transform_1, window_bounds = array<i64: 32, 32>}, {pipeline_mode = #tpu.pipeline_mode<synchronous>, transform_indices = @transform_2, window_bounds = array<i64: 1, 32>}, {pipeline_mode = #tpu.pipeline_mode<synchronous>, transform_indices = @transform_3, window_bounds = array<i64: 32, 32>}, {pipeline_mode = #tpu.pipeline_mode<synchronous>, transform_indices = @transform_4, window_bounds = array<i64: 1, 32>}, {pipeline_mode = #tpu.pipeline_mode<synchronous>, transform_indices = @transform_5, window_bounds = array<i64: 32, 128>}, {pipeline_mode = #tpu.pipeline_mode<synchronous>, transform_indices = @transform_6, window_bounds = array<i64: 1, 128>}, {transform_indices = @transform_7, window_bounds = array<i64: 2, 128>}]} {
    %c0_i32 = arith.constant 0 : i32
    %0 = arith.cmpi eq, %arg1, %c0_i32 : i32
    %1 = arith.extui %0 : i1 to i32
    %c0_i32_0 = arith.constant 0 : i32
    %2 = arith.cmpi ne, %1, %c0_i32_0 : i32
    scf.if %2 {
      %cst_9 = arith.constant 0.000000e+00 : f32
      %11 = vector.broadcast %cst_9 : f32 to vector<2x32xf32>
      %c0_10 = arith.constant 0 : index
      %c0_11 = arith.constant 0 : index
      %12 = vector.load %arg10[%c0_10, %c0_11] : memref<2x32xf32, #tpu.memory_space<vmem>>, vector<2x32xf32>
      tpu.vector_store %arg10[%c0_10, %c0_11], %11 {strides = array<i32>} : memref<2x32xf32, #tpu.memory_space<vmem>>, vector<2x32xf32>,
    } else {
    }
    %c0 = arith.constant 0 : index
    %c0_1 = arith.constant 0 : index
    %c0_2 = arith.constant 0 : index
    %3 = vector.load %arg2[%c0, %c0_1, %c0_2] : memref<2x8x32xf32, #tpu.memory_space<vmem>>, vector<2x8x32xf32>
    %c0_3 = arith.constant 0 : index
    %c0_4 = arith.constant 0 : index
    %4 = vector.load %arg10[%c0_3, %c0_4] : memref<2x32xf32, #tpu.memory_space<vmem>>, vector<2x32xf32>
    %cst = arith.constant dense<0.000000e+00> : vector<2x32xf32>
    %5 = vector.multi_reduction <add>, %3, %cst [1] : vector<2x8x32xf32> to vector<2x32xf32>
    %6 = arith.addf %4, %5 : vector<2x32xf32>
    %c0_5 = arith.constant 0 : index
    %c0_6 = arith.constant 0 : index
    %7 = vector.load %arg10[%c0_5, %c0_6] : memref<2x32xf32, #tpu.memory_space<vmem>>, vector<2x32xf32>
    tpu.vector_store %arg10[%c0_5, %c0_6], %6 {strides = array<i32>} : memref<2x32xf32, #tpu.memory_space<vmem>>, vector<2x32xf32>,
    %c0_i32_7 = arith.constant 0 : i32
    %8 = arith.cmpi eq, %arg1, %c0_i32_7 : i32
    %9 = arith.extui %8 : i1 to i32
    %c0_i32_8 = arith.constant 0 : i32
    %10 = arith.cmpi ne, %9, %c0_i32_8 : i32
    scf.if %10 {
      %c0_9 = arith.constant 0 : index
      %c0_10 = arith.constant 0 : index
      %11 = vector.load %arg10[%c0_9, %c0_10] : memref<2x32xf32, #tpu.memory_space<vmem>>, vector<2x32xf32>
      %cst_11 = arith.constant 1.250000e-01 : f32
      %12 = vector.broadcast %cst_11 : f32 to vector<2x32xf32>
      %13 = arith.mulf %11, %12 : vector<2x32xf32>
      %c0_12 = arith.constant 0 : index
      %c0_13 = arith.constant 0 : index
      %14 = vector.load %arg3[%c0_12, %c0_13] : memref<32x32xf32, #tpu.memory_space<vmem>>, vector<32x32xf32>
      %cst_14 = arith.constant dense<0.000000e+00> : vector<2x32xf32>
      %15 = tpu.matmul %13, %14, %cst_14 {dimension_numbers = #tpu.dot_dimension_numbers<[1], [0], [0], [1], [0, 0, 1, 1], [], []>} : vector<2x32xf32>, vector<32x32xf32>, vector<2x32xf32> -> vector<2x32xf32>
      %c0_15 = arith.constant 0 : index
      %c0_16 = arith.constant 0 : index
      %16 = vector.load %arg4[%c0_15, %c0_16] : memref<1x32xf32, #tpu.memory_space<vmem>>, vector<1x32xf32>
      %17 = vector.broadcast %16 : vector<1x32xf32> to vector<2x32xf32>
      %18 = arith.addf %15, %17 : vector<2x32xf32>
      %cst_17 = arith.constant 0.000000e+00 : f32
      %19 = vector.broadcast %cst_17 : f32 to vector<2x32xf32>
      %20 = arith.maximumf %18, %19 : vector<2x32xf32>
      %c0_18 = arith.constant 0 : index
      %c0_19 = arith.constant 0 : index
      %21 = vector.load %arg5[%c0_18, %c0_19] : memref<32x32xf32, #tpu.memory_space<vmem>>, vector<32x32xf32>
      %cst_20 = arith.constant dense<0.000000e+00> : vector<2x32xf32>
      %22 = tpu.matmul %20, %21, %cst_20 {dimension_numbers = #tpu.dot_dimension_numbers<[1], [0], [0], [1], [0, 0, 1, 1], [], []>} : vector<2x32xf32>, vector<32x32xf32>, vector<2x32xf32> -> vector<2x32xf32>
      %c0_21 = arith.constant 0 : index
      %c0_22 = arith.constant 0 : index
      %23 = vector.load %arg6[%c0_21, %c0_22] : memref<1x32xf32, #tpu.memory_space<vmem>>, vector<1x32xf32>
      %24 = vector.broadcast %23 : vector<1x32xf32> to vector<2x32xf32>
      %25 = arith.addf %22, %24 : vector<2x32xf32>
      %cst_23 = arith.constant 0.000000e+00 : f32
      %26 = vector.broadcast %cst_23 : f32 to vector<2x32xf32>
      %27 = arith.maximumf %25, %26 : vector<2x32xf32>
      %c0_24 = arith.constant 0 : index
      %c0_25 = arith.constant 0 : index
      %28 = vector.load %arg7[%c0_24, %c0_25] : memref<32x128xf32, #tpu.memory_space<vmem>>, vector<32x128xf32>
      %cst_26 = arith.constant dense<0.000000e+00> : vector<2x128xf32>
      %29 = tpu.matmul %27, %28, %cst_26 {dimension_numbers = #tpu.dot_dimension_numbers<[1], [0], [0], [1], [0, 0, 1, 1], [], []>} : vector<2x32xf32>, vector<32x128xf32>, vector<2x128xf32> -> vector<2x128xf32>
      %c0_27 = arith.constant 0 : index
      %c0_28 = arith.constant 0 : index
      %30 = vector.load %arg8[%c0_27, %c0_28] : memref<1x128xf32, #tpu.memory_space<vmem>>, vector<1x128xf32>
      %31 = vector.broadcast %30 : vector<1x128xf32> to vector<2x128xf32>
      %32 = arith.addf %29, %31 : vector<2x128xf32>
      %c0_29 = arith.constant 0 : index
      %c0_30 = arith.constant 0 : index
      %33 = vector.load %arg9[%c0_29, %c0_30] : memref<2x128xf32, #tpu.memory_space<vmem>>, vector<2x128xf32>
      tpu.vector_store %arg9[%c0_29, %c0_30], %32 {strides = array<i32>} : memref<2x128xf32, #tpu.memory_space<vmem>>, vector<2x128xf32>,
    } else {
    }
    return
  }
  func.func @transform_0(%arg0: i32, %arg1: i32) -> (i32, i32, i32) {
    %c0_i32 = arith.constant 0 : i32
    %c0_i32_0 = arith.constant 0 : i32
    return %arg0, %arg1, %c0_i32 : i32, i32, i32
  }
  func.func @transform_1(%arg0: i32, %arg1: i32) -> (i32, i32) {
    %c0_i32 = arith.constant 0 : i32
    %c0_i32_0 = arith.constant 0 : i32
    %c0_i32_1 = arith.constant 0 : i32
    return %c0_i32, %c0_i32_0 : i32, i32
  }
  func.func @transform_2(%arg0: i32, %arg1: i32) -> (i32, i32) {
    %c0_i32 = arith.constant 0 : i32
    %c0_i32_0 = arith.constant 0 : i32
    %c0_i32_1 = arith.constant 0 : i32
    return %c0_i32, %c0_i32_0 : i32, i32
  }
  func.func @transform_3(%arg0: i32, %arg1: i32) -> (i32, i32) {
    %c0_i32 = arith.constant 0 : i32
    %c0_i32_0 = arith.constant 0 : i32
    %c0_i32_1 = arith.constant 0 : i32
    return %c0_i32, %c0_i32_0 : i32, i32
  }
  func.func @transform_4(%arg0: i32, %arg1: i32) -> (i32, i32) {
    %c0_i32 = arith.constant 0 : i32
    %c0_i32_0 = arith.constant 0 : i32
    %c0_i32_1 = arith.constant 0 : i32
    return %c0_i32, %c0_i32_0 : i32, i32
  }
  func.func @transform_5(%arg0: i32, %arg1: i32) -> (i32, i32) {
    %c0_i32 = arith.constant 0 : i32
    %c0_i32_0 = arith.constant 0 : i32
    %c0_i32_1 = arith.constant 0 : i32
    return %c0_i32, %c0_i32_0 : i32, i32
  }
  func.func @transform_6(%arg0: i32, %arg1: i32) -> (i32, i32) {
    %c0_i32 = arith.constant 0 : i32
    %c0_i32_0 = arith.constant 0 : i32
    %c0_i32_1 = arith.constant 0 : i32
    return %c0_i32, %c0_i32_0 : i32, i32
  }
  func.func @transform_7(%arg0: i32, %arg1: i32) -> (i32, i32) {
    %c0_i32 = arith.constant 0 : i32
    %c0_i32_0 = arith.constant 0 : i32
    return %arg0, %c0_i32 : i32, i32
  }
}

</mosaic_0001>

<llo_original>
// kernel: tpu_custom_call.1
$region0: #{tpu_custom_call.1}
  #allocation0 [shape = 'u32[]', space=smem, size = 0x4, offset = 0x4, fixed_abs, tag = 'smem constant byte address 0x4 - core index']
  #allocation1 [shape = 'u32[144,128]{1,0:T(1,128)}', space=vmem, size = 0x12000, scoped, tag = 'internal scratch']
  #allocation2 [shape = 'f32[2,32]{1,0:T(2,128)}', space=vmem, size = 0x400, scoped, tag = 'scratch operand']
  %s0 = inlined_call_operand.hbm [shape: f32[2,8,32], index: 0, kind: input, shape index: {}]
  %s1 = inlined_call_operand.hbm [shape: f32[32,32], index: 1, kind: input, shape index: {}]
  %s2 = inlined_call_operand.vmem [shape: f32[1,32], index: 2, kind: input, shape index: {}]
  %s3 = inlined_call_operand.hbm [shape: f32[32,32], index: 3, kind: input, shape index: {}]
  %s4 = inlined_call_operand.vmem [shape: f32[1,32], index: 4, kind: input, shape index: {}]
  %s5 = inlined_call_operand.hbm [shape: f32[32,128], index: 5, kind: input, shape index: {}]
  %s6 = inlined_call_operand.vmem [shape: f32[1,128], index: 6, kind: input, shape index: {}]
  %s7 = inlined_call_operand.hbm [shape: f32[2,128], index: 7, kind: output, shape index: {}]
  %s8 = sld [smem:[#allocation0]]
  $region62: #{tpu_custom_call.1} parent=0
    _
  %s10 = ssub.s32 1, %s8
  %s11 = scalar_select 0, %s10, %s8
  $region1: #{tpu_custom_call.1} parent=0
    #allocation3 [shape = 'u8[8192]{0}', space=vmem, size = 0x2000, scoped, tag = 'input window, operand 0, single buffered']
    #allocation4 [shape = 's32[1]{0}', space=sflag, size = 0x4, scoped, tag = 'scoped memory for tpu_custom_call.1']
    #allocation5 [shape = 's32[1]{0}', space=sflag, size = 0x4, scoped, tag = 'scoped memory for tpu_custom_call.1']
    #allocation6 [shape = 'u8[16384]{0}', space=vmem, size = 0x4000, scoped, tag = 'input window, operand 1, single buffered']
    #allocation7 [shape = 's32[1]{0}', space=sflag, size = 0x4, scoped, tag = 'scoped memory for tpu_custom_call.1']
    #allocation8 [shape = 'u8[16384]{0}', space=vmem, size = 0x4000, scoped, tag = 'input window, operand 3, single buffered']
    #allocation9 [shape = 'u8[16384]{0}', space=vmem, size = 0x4000, scoped, tag = 'input window, operand 5, single buffered']
    #allocation10 [shape = 's32[1]{0}', space=sflag, size = 0x4, scoped, tag = 'scoped memory for tpu_custom_call.1']
    #allocation11 [shape = 'u8[1024]{0}', space=vmem, size = 0x400, scoped, tag = 'output window, operand 0, single buffered']
    %12 = vsyncpa [#allocation4], 0
    %13 = vsyncpa [#allocation7], 0
    %14 = vsyncpa [#allocation10], 0
    %15 = vsyncpa [#allocation5], 0
    // Predicated region
    $region2: #{tpu_custom_call.1} parent=1 // pred_check
      _
    $region3: #{tpu_custom_call.1} parent=1 // pred_check_branch
      %17 = sbr.rel (0) target = $region5
    $region4: #{tpu_custom_call.1} parent=1 // pred_region
      %s19 = ssub.s32 256, 256
      %20 = vsyncadd [#allocation4], %s19
      %s21 = sshll.u32 [#allocation3], 4
      %s22 = int_to_ptr.vmem [resolvable:$true] %s21
      %27 = dma.hbm_to_vmem [thread:$0]  %s0, 256, %s22, [#allocation4], 128, 128, 8
    $region5: #{tpu_custom_call.1} parent=1 // pred_fallthru
      _
    // Predicated region
    $region6: #{tpu_custom_call.1} parent=1 // pred_check
      _
    $region7: #{tpu_custom_call.1} parent=1 // pred_check_branch
      %29 = sbr.rel (0) target = $region9
    $region8: #{tpu_custom_call.1} parent=1 // pred_region
      %s31 = ssub.s32 512, 512
      %32 = vsyncadd [#allocation7], %s31
      %s33 = sshll.u32 [#allocation6], 4
      %s34 = int_to_ptr.vmem [resolvable:$true] %s33
      %39 = dma.hbm_to_vmem [thread:$0]  %s1, 512, %s34, [#allocation7], 128, 128, 8
    $region9: #{tpu_custom_call.1} parent=1 // pred_fallthru
      _
    // Predicated region
    $region10: #{tpu_custom_call.1} parent=1 // pred_check
      _
    $region11: #{tpu_custom_call.1} parent=1 // pred_check_branch
      %41 = sbr.rel (0) target = $region13
    $region12: #{tpu_custom_call.1} parent=1 // pred_region
      _
    $region13: #{tpu_custom_call.1} parent=1 // pred_fallthru
      _
    // Predicated region
    $region14: #{tpu_custom_call.1} parent=1 // pred_check
      _
    $region15: #{tpu_custom_call.1} parent=1 // pred_check_branch
      %43 = sbr.rel (0) target = $region17
    $region16: #{tpu_custom_call.1} parent=1 // pred_region
      %s45 = ssub.s32 512, 512
      %46 = vsyncadd [#allocation7], %s45
      %s47 = sshll.u32 [#allocation8], 4
      %s48 = int_to_ptr.vmem [resolvable:$true] %s47
      %53 = dma.hbm_to_vmem [thread:$0]  %s3, 512, %s48, [#allocation7], 128, 128, 8
    $region17: #{tpu_custom_call.1} parent=1 // pred_fallthru
      _
    // Predicated region
    $region18: #{tpu_custom_call.1} parent=1 // pred_check
      _
    $region19: #{tpu_custom_call.1} parent=1 // pred_check_branch
      %55 = sbr.rel (0) target = $region21
    $region20: #{tpu_custom_call.1} parent=1 // pred_region
      _
    $region21: #{tpu_custom_call.1} parent=1 // pred_fallthru
      _
    // Predicated region
    $region22: #{tpu_custom_call.1} parent=1 // pred_check
      _
    $region23: #{tpu_custom_call.1} parent=1 // pred_check_branch
      %57 = sbr.rel (0) target = $region25
    $region24: #{tpu_custom_call.1} parent=1 // pred_region
      %s59 = ssub.s32 512, 512
      %60 = vsyncadd [#allocation10], %s59
      %s61 = sshll.u32 [#allocation9], 4
      %s62 = int_to_ptr.vmem [resolvable:$true] %s61
      %67 = dma.hbm_to_vmem [thread:$0]  %s5, 512, %s62, [#allocation10], 128, 128, 8
    $region25: #{tpu_custom_call.1} parent=1 // pred_fallthru
      _
    // Predicated region
    $region26: #{tpu_custom_call.1} parent=1 // pred_check
      _
    $region27: #{tpu_custom_call.1} parent=1 // pred_check_branch
      %69 = sbr.rel (0) target = $region29
    $region28: #{tpu_custom_call.1} parent=1 // pred_region
      _
    $region29: #{tpu_custom_call.1} parent=1 // pred_fallthru
      _
    // Predicated region
    $region30: #{tpu_custom_call.1} parent=1 // pred_check
      _
    $region31: #{tpu_custom_call.1} parent=1 // pred_check_branch
      %71 = sbr.rel (0) target = $region33
    $region32: #{tpu_custom_call.1} parent=1 // pred_region
      %72 = dma.done [#allocation4], 256
    $region33: #{tpu_custom_call.1} parent=1 // pred_fallthru
      _
    // Predicated region
    $region34: #{tpu_custom_call.1} parent=1 // pred_check
      _
    $region35: #{tpu_custom_call.1} parent=1 // pred_check_branch
      %74 = sbr.rel (0) target = $region37
    $region36: #{tpu_custom_call.1} parent=1 // pred_region
      %75 = dma.done [#allocation7], 512
    $region37: #{tpu_custom_call.1} parent=1 // pred_fallthru
      _
    // Predicated region
    $region38: #{tpu_custom_call.1} parent=1 // pred_check
      _
    $region39: #{tpu_custom_call.1} parent=1 // pred_check_branch
      %77 = sbr.rel (0) target = $region41
    $region40: #{tpu_custom_call.1} parent=1 // pred_region
      %78 = dma.done [#allocation7], 512
    $region41: #{tpu_custom_call.1} parent=1 // pred_fallthru
      _
    // Predicated region
    $region42: #{tpu_custom_call.1} parent=1 // pred_check
      _
    $region43: #{tpu_custom_call.1} parent=1 // pred_check_branch
      %80 = sbr.rel (0) target = $region45
    $region44: #{tpu_custom_call.1} parent=1 // pred_region
      %81 = dma.done [#allocation10], 512
    $region45: #{tpu_custom_call.1} parent=1 // pred_fallthru
      _
    %p82 = scmp.eq.s32.totalorder 0, 0
    // Predicated region
    $region46: #{tpu_custom_call.1} parent=1 // pred_check
      %p83 = pneg %p82
    $region47: #{tpu_custom_call.1} parent=1 // pred_check_branch
      %85 = sbr.rel (%p83) target = $region49
    $region48: #{tpu_custom_call.1} parent=1 // pred_region
      %vm86 = vcmask 254976
      %87 = vst.msk [vmem:[#allocation2] sm:$0x3] %vm86, 0.0
    $region49: #{tpu_custom_call.1} parent=1 // pred_fallthru
      _
    %v88 = vld [vmem:[#allocation3] sm:$0xff]
    %v89 = vld [vmem:[#allocation3 + $0x8] sm:$0xff]
    %v90 = vld [vmem:[#allocation2] sm:$0x3]
    %vm91 = vcmask 261120
    %v92 = vsel %vm91, %v88, 0.0
    %v93 = vrot.slane %v92, 4
    %v94 = vadd.f32 %v92, %v93
    %v95 = vrot.slane %v94, 2
    %v96 = vadd.f32 %v94, %v95
    %v97 = vrot.slane %v96, 1
    %v98 = vadd.f32 %v96, %v97
    %v99 = vsel %vm91, %v89, 0.0
    %v100 = vrot.slane %v99, 4
    %v101 = vadd.f32 %v99, %v100
    %v102 = vrot.slane %v101, 2
    %v103 = vadd.f32 %v101, %v102
    %v104 = vrot.slane %v103, 1
    %v105 = vadd.f32 %v103, %v104
    %vm108 = vcmask 1041409
    %v109 = vsel %vm108, %v105, %v98
    %v111 = vadd.f32 %v90, %v109
    %vm112 = vcmask 254976
    %113 = vst.msk [vmem:[#allocation2] sm:$0x3] %vm112, %v111
    // Predicated region
    $region50: #{tpu_custom_call.1} parent=1 // pred_check
      %p114 = pneg %p82
    $region51: #{tpu_custom_call.1} parent=1 // pred_check_branch
      %116 = sbr.rel (%p114) target = $region53
    $region52: #{tpu_custom_call.1} parent=1 // pred_region
      %v117 = vld [vmem:[#allocation2] sm:$0x3]
      %v118 = vmul.f32 %v117, 0.125
      %v119 = vld [vmem:[#allocation6] sm:$0xff]
      %v120 = vld [vmem:[#allocation6 + $0x8] sm:$0xff]
      %v121 = vld [vmem:[#allocation6 + $0x10] sm:$0xff]
      %v122 = vld [vmem:[#allocation6 + $0x18] sm:$0xff]
      %v123 = vld [vmem:[%s2] sm:$0x1]
      %v125 = vlaneseq
      %v126 = vshrl.u32 %v125, 7
      %v127 = vsub.s32 0, %v126
      %v128 = vrot.slane %v123, %v127
      %v131 = vsel %vm91, %v118, 0
      %133 = vmatprep.subr.mxu0 0.0
      %134 = vmatpush1.msra.mxu0 0.0
      %135 = vmatprep.subr.mxu0 0.0
      %136 = vmatpush1.msra.mxu0 0.0
      %137 = vmatprep.subr.mxu0 0.0
      %138 = vmatpush1.msra.mxu0 0.0
      %139 = vmatprep.subr.mxu0 0.0
      %140 = vmatpush1.msra.mxu0 0.0
      %141 = vmatprep.subr.mxu0 0.0
      %142 = vmatpush1.msra.mxu0 0.0
      %143 = vmatprep.subr.mxu0 0.0
      %144 = vmatpush1.msra.mxu0 0.0
      %145 = vmatprep.subr.mxu0 0.0
      %146 = vmatpush1.msra.mxu0 0.0
      %147 = vmatprep.subr.mxu0 0.0
      %148 = vmatpush1.msra.mxu0 0.0
      %149 = vmatprep.subr.mxu0 0.0
      %150 = vmatpush1.msra.mxu0 0.0
      %151 = vmatprep.subr.mxu0 0.0
      %152 = vmatpush1.msra.mxu0 0.0
      %153 = vmatprep.subr.mxu0 0.0
      %154 = vmatpush1.msra.mxu0 0.0
      %155 = vmatprep.subr.mxu0 0.0
      %156 = vmatpush1.msra.mxu0 0.0
      %157 = vmatprep.subr.mxu0 0.0
      %158 = vmatpush1.msra.mxu0 %v122
      %159 = vmatprep.subr.mxu0 0.0
      %160 = vmatpush1.msra.mxu0 %v121
      %161 = vmatprep.subr.mxu0 0.0
      %162 = vmatpush1.msra.mxu0 %v120
      %163 = vmatprep.subr.mxu0 0.0
      %164 = vmatpush1.msra.mxu0 %v119
      %165 = vmatprep.subr.mxu0 0.0
      %166 = vmatpush2.msra.mxu0 0.0
      %167 = vmatprep.subr.mxu0 0.0
      %168 = vmatpush2.msra.mxu0 0.0
      %169 = vmatprep.subr.mxu0 0.0
      %170 = vmatpush2.msra.mxu0 0.0
      %171 = vmatprep.subr.mxu0 0.0
      %172 = vmatpush2.msra.mxu0 0.0
      %173 = vmatprep.subr.mxu0 0.0
      %174 = vmatpush2.msra.mxu0 0.0
      %175 = vmatprep.subr.mxu0 0.0
      %176 = vmatpush2.msra.mxu0 0.0
      %177 = vmatprep.subr.mxu0 0.0
      %178 = vmatpush2.msra.mxu0 0.0
      %179 = vmatprep.subr.mxu0 0.0
      %180 = vmatpush2.msra.mxu0 0.0
      %181 = vmatprep.subr.mxu0 0.0
      %182 = vmatpush2.msra.mxu0 0.0
      %183 = vmatprep.subr.mxu0 0.0
      %184 = vmatpush2.msra.mxu0 0.0
      %185 = vmatprep.subr.mxu0 0.0
      %186 = vmatpush2.msra.mxu0 0.0
      %187 = vmatprep.subr.mxu0 0.0
      %188 = vmatpush2.msra.mxu0 0.0
      %189 = vmatprep.subr.mxu0 0.0
      %190 = vmatpush2.msra.mxu0 0.0
      %191 = vmatprep.subr.mxu0 0.0
      %192 = vmatpush2.msra.mxu0 0.0
      %193 = vmatprep.subr.mxu0 0.0
      %194 = vmatpush2.msra.mxu0 0.0
      %195 = vmatprep.subr.mxu0 0.0
      %196 = vmatpush2.msra.mxu0 0.0
      %197 = vmatprep.mubr.f32.mxu0 0.0
      %198 = vmatmul.mubr.f32.gmra.mxu0 %v131
      %v199 = vpop.f32.mrf.mxu0
      %v200 = vadd.f32 %v128, %v199
      %v201 = vpop.f32.mrf.mxu0
      %202 = vdwg.mxu0
      %v203 = vmax.f32 %v200, 0.0
      %v204 = vld [vmem:[#allocation8] sm:$0xff]
      %v205 = vld [vmem:[#allocation8 + $0x8] sm:$0xff]
      %v206 = vld [vmem:[#allocation8 + $0x10] sm:$0xff]
      %v207 = vld [vmem:[#allocation8 + $0x18] sm:$0xff]
      %v208 = vld [vmem:[%s4] sm:$0x1]
      %v210 = vlaneseq
      %v211 = vshrl.u32 %v210, 7
      %v212 = vsub.s32 0, %v211
      %v213 = vrot.slane %v208, %v212
      %v216 = vsel %vm91, %v203, 0
      %218 = vmatprep.subr.mxu0 0.0
      %219 = vmatpush1.msra.mxu0 0.0
      %220 = vmatprep.subr.mxu0 0.0
      %221 = vmatpush1.msra.mxu0 0.0
      %222 = vmatprep.subr.mxu0 0.0
      %223 = vmatpush1.msra.mxu0 0.0
      %224 = vmatprep.subr.mxu0 0.0
      %225 = vmatpush1.msra.mxu0 0.0
      %226 = vmatprep.subr.mxu0 0.0
      %227 = vmatpush1.msra.mxu0 0.0
      %228 = vmatprep.subr.mxu0 0.0
      %229 = vmatpush1.msra.mxu0 0.0
      %230 = vmatprep.subr.mxu0 0.0
      %231 = vmatpush1.msra.mxu0 0.0
      %232 = vmatprep.subr.mxu0 0.0
      %233 = vmatpush1.msra.mxu0 0.0
      %234 = vmatprep.subr.mxu0 0.0
      %235 = vmatpush1.msra.mxu0 0.0
      %236 = vmatprep.subr.mxu0 0.0
      %237 = vmatpush1.msra.mxu0 0.0
      %238 = vmatprep.subr.mxu0 0.0
      %239 = vmatpush1.msra.mxu0 0.0
      %240 = vmatprep.subr.mxu0 0.0
      %241 = vmatpush1.msra.mxu0 0.0
      %242 = vmatprep.subr.mxu0 0.0
      %243 = vmatpush1.msra.mxu0 %v207
      %244 = vmatprep.subr.mxu0 0.0
      %245 = vmatpush1.msra.mxu0 %v206
      %246 = vmatprep.subr.mxu0 0.0
      %247 = vmatpush1.msra.mxu0 %v205
      %248 = vmatprep.subr.mxu0 0.0
      %249 = vmatpush1.msra.mxu0 %v204
      %250 = vmatprep.subr.mxu0 0.0
      %251 = vmatpush2.msra.mxu0 0.0
      %252 = vmatprep.subr.mxu0 0.0
      %253 = vmatpush2.msra.mxu0 0.0
      %254 = vmatprep.subr.mxu0 0.0
      %255 = vmatpush2.msra.mxu0 0.0
      %256 = vmatprep.subr.mxu0 0.0
      %257 = vmatpush2.msra.mxu0 0.0
      %258 = vmatprep.subr.mxu0 0.0
      %259 = vmatpush2.msra.mxu0 0.0
      %260 = vmatprep.subr.mxu0 0.0
      %261 = vmatpush2.msra.mxu0 0.0
      %262 = vmatprep.subr.mxu0 0.0
      %263 = vmatpush2.msra.mxu0 0.0
      %264 = vmatprep.subr.mxu0 0.0
      %265 = vmatpush2.msra.mxu0 0.0
      %266 = vmatprep.subr.mxu0 0.0
      %267 = vmatpush2.msra.mxu0 0.0
      %268 = vmatprep.subr.mxu0 0.0
      %269 = vmatpush2.msra.mxu0 0.0
      %270 = vmatprep.subr.mxu0 0.0
      %271 = vmatpush2.msra.mxu0 0.0
      %272 = vmatprep.subr.mxu0 0.0
      %273 = vmatpush2.msra.mxu0 0.0
      %274 = vmatprep.subr.mxu0 0.0
      %275 = vmatpush2.msra.mxu0 0.0
      %276 = vmatprep.subr.mxu0 0.0
      %277 = vmatpush2.msra.mxu0 0.0
      %278 = vmatprep.subr.mxu0 0.0
      %279 = vmatpush2.msra.mxu0 0.0
      %280 = vmatprep.subr.mxu0 0.0
      %281 = vmatpush2.msra.mxu0 0.0
      %282 = vmatprep.mubr.f32.mxu0 0.0
      %283 = vmatmul.mubr.f32.gmra.mxu0 %v216
      %v284 = vpop.f32.mrf.mxu0
      %v285 = vadd.f32 %v213, %v284
      %v286 = vpop.f32.mrf.mxu0
      %287 = vdwg.mxu0
      %v288 = vmax.f32 %v285, 0.0
      %v289 = vld [vmem:[#allocation9] sm:$0xff]
      %v290 = vld [vmem:[#allocation9 + $0x8] sm:$0xff]
      %v291 = vld [vmem:[#allocation9 + $0x10] sm:$0xff]
      %v292 = vld [vmem:[#allocation9 + $0x18] sm:$0xff]
      %v293 = vld [vmem:[%s6] sm:$0x1]
      %v295 = vlaneseq
      %v296 = vshrl.u32 %v295, 7
      %v297 = vsub.s32 0, %v296
      %v298 = vrot.slane %v293, %v297
      %v301 = vsel %vm91, %v288, 0
      %303 = vmatprep.subr.mxu0 0.0
      %304 = vmatpush1.msra.mxu0 0.0
      %305 = vmatprep.subr.mxu0 0.0
      %306 = vmatpush1.msra.mxu0 0.0
      %307 = vmatprep.subr.mxu0 0.0
      %308 = vmatpush1.msra.mxu0 0.0
      %309 = vmatprep.subr.mxu0 0.0
      %310 = vmatpush1.msra.mxu0 0.0
      %311 = vmatprep.subr.mxu0 0.0
      %312 = vmatpush1.msra.mxu0 0.0
      %313 = vmatprep.subr.mxu0 0.0
      %314 = vmatpush1.msra.mxu0 0.0
      %315 = vmatprep.subr.mxu0 0.0
      %316 = vmatpush1.msra.mxu0 0.0
      %317 = vmatprep.subr.mxu0 0.0
      %318 = vmatpush1.msra.mxu0 0.0
      %319 = vmatprep.subr.mxu0 0.0
      %320 = vmatpush1.msra.mxu0 0.0
      %321 = vmatprep.subr.mxu0 0.0
      %322 = vmatpush1.msra.mxu0 0.0
      %323 = vmatprep.subr.mxu0 0.0
      %324 = vmatpush1.msra.mxu0 0.0
      %325 = vmatprep.subr.mxu0 0.0
      %326 = vmatpush1.msra.mxu0 0.0
      %327 = vmatprep.subr.mxu0 0.0
      %328 = vmatpush1.msra.mxu0 %v292
      %329 = vmatprep.subr.mxu0 0.0
      %330 = vmatpush1.msra.mxu0 %v291
      %331 = vmatprep.subr.mxu0 0.0
      %332 = vmatpush1.msra.mxu0 %v290
      %333 = vmatprep.subr.mxu0 0.0
      %334 = vmatpush1.msra.mxu0 %v289
      %335 = vmatprep.subr.mxu0 0.0
      %336 = vmatpush2.msra.mxu0 0.0
      %337 = vmatprep.subr.mxu0 0.0
      %338 = vmatpush2.msra.mxu0 0.0
      %339 = vmatprep.subr.mxu0 0.0
      %340 = vmatpush2.msra.mxu0 0.0
      %341 = vmatprep.subr.mxu0 0.0
      %342 = vmatpush2.msra.mxu0 0.0
      %343 = vmatprep.subr.mxu0 0.0
      %344 = vmatpush2.msra.mxu0 0.0
      %345 = vmatprep.subr.mxu0 0.0
      %346 = vmatpush2.msra.mxu0 0.0
      %347 = vmatprep.subr.mxu0 0.0
      %348 = vmatpush2.msra.mxu0 0.0
      %349 = vmatprep.subr.mxu0 0.0
      %350 = vmatpush2.msra.mxu0 0.0
      %351 = vmatprep.subr.mxu0 0.0
      %352 = vmatpush2.msra.mxu0 0.0
      %353 = vmatprep.subr.mxu0 0.0
      %354 = vmatpush2.msra.mxu0 0.0
      %355 = vmatprep.subr.mxu0 0.0
      %356 = vmatpush2.msra.mxu0 0.0
      %357 = vmatprep.subr.mxu0 0.0
      %358 = vmatpush2.msra.mxu0 0.0
      %359 = vmatprep.subr.mxu0 0.0
      %360 = vmatpush2.msra.mxu0 0.0
      %361 = vmatprep.subr.mxu0 0.0
      %362 = vmatpush2.msra.mxu0 0.0
      %363 = vmatprep.subr.mxu0 0.0
      %364 = vmatpush2.msra.mxu0 0.0
      %365 = vmatprep.subr.mxu0 0.0
      %366 = vmatpush2.msra.mxu0 0.0
      %367 = vmatprep.mubr.f32.mxu0 0.0
      %368 = vmatmul.mubr.f32.gmra.mxu0 %v301
      %v369 = vpop.f32.mrf.mxu0
      %v370 = vadd.f32 %v298, %v369
      %v371 = vpop.f32.mrf.mxu0
      %372 = vdwg.mxu0
      %373 = vst [vmem:[#allocation11] sm:$0x3] %v370
    $region53: #{tpu_custom_call.1} parent=1 // pred_fallthru
      _
    // Predicated region
    $region54: #{tpu_custom_call.1} parent=1 // pred_check
      _
    $region55: #{tpu_custom_call.1} parent=1 // pred_check_branch
      %375 = sbr.rel (0) target = $region57
    $region56: #{tpu_custom_call.1} parent=1 // pred_region
      %s377 = ssub.s32 32, 32
      %378 = vsyncadd [#allocation5], %s377
      %s380 = sshll.u32 [#allocation11], 4
      %s381 = int_to_ptr.vmem [resolvable:$true] %s380
      %383 = dma.vmem_to_hbm [thread:$0]  %s381, 32, %s7, [#allocation5]
    $region57: #{tpu_custom_call.1} parent=1 // pred_fallthru
      _
    // Predicated region
    $region58: #{tpu_custom_call.1} parent=1 // pred_check
      _
    $region59: #{tpu_custom_call.1} parent=1 // pred_check_branch
      %385 = sbr.rel (0) target = $region61
    $region60: #{tpu_custom_call.1} parent=1 // pred_region
      %386 = dma.done [#allocation5], 32
    $region61: #{tpu_custom_call.1} parent=1 // pred_fallthru
      _
    %387 = vsyncpa [#allocation4], 1
    %388 = vsyncpa [#allocation7], 1
    %389 = vsyncpa [#allocation10], 1
    %390 = vsyncpa [#allocation5], 1

</llo_original>
